<compile_context>
chip_gen: v5e
topology: v5e:2x2
jax: 0.10.0
libtpu: 0.0.40
codegen_flags: <defaults>
</compile_context>

<pallas_src>
import math

import jax
import jax.numpy as jnp
from jax.experimental import pallas as pl
from jax.experimental.pallas import tpu as pltpu

_LANE = 128


# ---------------------------------------------------------------------------
# Helpers: padded-VMEM accounting and tile selection
# ---------------------------------------------------------------------------

def _round_up(v, m):
    return ((v + m - 1) // m) * m


def _sublane_multiple(itemsize):
    # f32 -> 8, bf16 -> 16, int8/fp8 -> 32 (sub-32-bit dtypes pack along sublanes)
    return max(8, 32 // max(int(itemsize), 1))


def _vmem_limit_bytes():
    """Generation-aware VMEM limit: ~3/4 of physical, capped at 96 MiB.

    v7x (64 MiB / TC)   -> 48 MiB
    v5e / v6e (128 MiB) -> 96 MiB
    unknown             -> 48 MiB (conservative)
    """
    cap = None
    try:
        info = pltpu.get_tpu_info()
        cap = getattr(info, "vmem_capacity_bytes", None)
    except Exception:
        cap = None
    if not cap:
        cap = 64 * 1024 * 1024
    return max(16 * 1024 * 1024, min(int(cap) * 3 // 4, 96 * 1024 * 1024))


def _choose_tiles(n, c, hw, itemsize, channels_last, kp, budget_bytes):
    """Pick (batch_tile, spatial_chunk) from a PADDED-byte VMEM budget."""
    sub = _sublane_multiple(itemsize)
    if channels_last:
        # x block (tn, thw, c): thw -> sublanes, c -> lanes
        row_pad = _round_up(hw, sub) * _round_up(c, _LANE) * itemsize
        def chunk_pad(tn, thw):
            return tn * _round_up(thw, sub) * _round_up(c, _LANE) * itemsize
        gran = sub
        per_thw = _round_up(c, _LANE) * itemsize
    else:
        # x block (tn, c, thw): c -> sublanes, thw -> lanes
        row_pad = _round_up(c, sub) * _round_up(hw, _LANE) * itemsize
        def chunk_pad(tn, thw):
            return tn * _round_up(c, sub) * _round_up(thw, _LANE) * itemsize
        gran = _LANE
        per_thw = _round_up(c, sub) * itemsize

    # double-buffered input block + in-kernel f32 working copy of the chunk
    factor = 2 + max(1, 4 // itemsize)

    # Resident independently of tn: f32 weight (c, kp) + bias, both double-buffered,
    # plus slack for Mosaic internal scratch.
    w_bytes = _round_up(c, 8) * kp * 4
    b_bytes = 8 * kp * 4
    fixed = 2 * (w_bytes + b_bytes) + (2 << 20)
    avail = max(budget_bytes - fixed, 1 << 20)

    # Batch tile assuming the full spatial extent fits in one chunk.
    per_row = factor * row_pad + _round_up(c, _LANE) * 4 + 2 * kp * 4  # x + acc + out
    tn = max(1, avail // per_row)
    tn = min(tn, n)
    if n >= 2:
        tn = min(tn, -(-n // 2))          # >= 2 parallel steps: feeds both v7x TCs
    if n >= 64:
        tn = min(tn, -(-n // 8))          # >= 8 parallel steps at larger batches
    if tn > 8:
        tn = (tn // 8) * 8                # sublane-friendly acc / output rows
    tn = max(1, min(tn, n))

    # Spatial chunk for this tn (only shrinks below hw when a full row can't fit).
    acc_bytes = _round_up(tn, 8) * _round_up(c, _LANE) * 4
    out_bytes = 2 * _round_up(tn, 8) * kp * 4
    x_budget = max(avail - acc_bytes - out_bytes, 1 << 19) // factor
    if chunk_pad(tn, hw) <= x_budget:
        thw = hw
    else:
        max_pad_thw = max(x_budget // max(tn * per_thw, 1), gran)
        thw = max(gran, (max_pad_thw // gran) * gran)
        thw = min(thw, hw)
    return tn, thw


# ---------------------------------------------------------------------------
# Kernel
# ---------------------------------------------------------------------------

def _make_kernel(reduce_axis, hw, thw, n_chunks):
    """GAP + Linear with a spatial-reduction grid axis.

    reduce_axis: axis of the x block holding the spatial chunk
                 (2 for NCHW blocks (tn, c, thw), 1 for NHWC blocks (tn, thw, c)).
    """
    needs_mask = (hw % thw) != 0

    def kernel(x_ref, w_ref, b_ref, o_ref, acc_ref):
        j = pl.program_id(1)

        @pl.when(j == 0)
        def _init():
            acc_ref[...] = jnp.zeros_like(acc_ref)

        x = x_ref[...]                              # native dtype spatial chunk
        if needs_mask:
            # Zero the out-of-range spatial padding of the last chunk.
            pos = jax.lax.broadcasted_iota(jnp.int32, x.shape, reduce_axis)
            x = jnp.where(j * thw + pos < hw, x, jnp.zeros_like(x))

        # Chunk-bounded spatial sum accumulated in f32 (the f32 working copy is
        # limited to one chunk and is accounted for in the VMEM budget).
        # TODO(synk): this contraction could also run on the MXU against a ones
        # vector to skip the VPU convert entirely.
        acc_ref[...] += jnp.sum(x.astype(jnp.float32), axis=reduce_axis)

        @pl.when(j == n_chunks - 1)
        def _finalize():
            # 1/HW is folded into w_ref, so acc holds raw spatial sums.
            o_ref[0] = (
                jnp.dot(acc_ref[...], w_ref[...], preferred_element_type=jnp.float32)
                + b_ref[...]
            )

    return kernel


# ---------------------------------------------------------------------------
# Wrapper
# ---------------------------------------------------------------------------

def sk_clf_head(x, weight, bias, *, channels_last=False, max_vmem_bytes=None):
    """Forward pass of SKClfHead: global average pool over spatial dims + Linear.

    Args:
      x: (N, C, H, W) if channels_last=False (PyTorch NCHW), else (N, H, W, C).
         Streamed in its native dtype; accumulation is f32.
      weight: (num_classes, C) Linear weight (PyTorch layout).
      bias:   (num_classes,)   Linear bias.
      channels_last: consume an NHWC feature map lane-densely (no transpose added).
      max_vmem_bytes: optional override of the tiling byte budget (testing knob).

    Returns:
      (N, num_classes) float32 logits.
    """
    if channels_last:
        n, h, w_sp, c = x.shape
        hw = h * w_sp
        x_flat = x.reshape(n, hw, c)
        reduce_axis = 1
    else:
        n, c, h, w_sp = x.shape
        hw = h * w_sp
        x_flat = x.reshape(n, c, hw)
        reduce_axis = 2

    k = weight.shape[0]
    kp = _round_up(k, _LANE)                 # lane-dense, unmasked output stores

    # (C, Kp) weight with the 1/HW mean-scale folded in; zero-padded class columns
    # are sliced off after the kernel.
    w_t = jnp.transpose(weight).astype(jnp.float32) / float(hw)
    b2d = bias.astype(jnp.float32).reshape(1, k)
    if kp != k:
        w_t = jnp.pad(w_t, ((0, 0), (0, kp - k)))
        b2d = jnp.pad(b2d, ((0, 0), (0, kp - k)))

    limit = _vmem_limit_bytes()
    budget = min(limit, int(max_vmem_bytes)) if max_vmem_bytes else limit
    itemsize = x.dtype.itemsize
    tn, thw = _choose_tiles(n, c, hw, itemsize, channels_last, kp, budget)
    n_chunks = -(-hw // thw)
    nt = -(-n // tn)

    if channels_last:
        x_block = (tn, thw, c)
        x_map = lambda i, j: (i, j, 0)
    else:
        x_block = (tn, c, thw)
        x_map = lambda i, j: (i, 0, j)

    kernel = _make_kernel(reduce_axis, hw, thw, n_chunks)

    out = pl.pallas_call(
        kernel,
        out_shape=jax.ShapeDtypeStruct((nt, tn, kp), jnp.float32),
        grid=(nt, n_chunks),
        in_specs=[
            pl.BlockSpec(x_block, x_map),
            pl.BlockSpec((c, kp), lambda i, j: (0, 0)),   # resident across grid
            pl.BlockSpec((1, kp), lambda i, j: (0, 0)),   # resident across grid
        ],
        out_specs=pl.BlockSpec((1, tn, kp), lambda i, j: (i, 0, 0)),
        scratch_shapes=[pltpu.VMEM((tn, c), jnp.float32)],
        compiler_params=pltpu.CompilerParams(
            dimension_semantics=("parallel", "arbitrary"),
            vmem_limit_bytes=int(limit),
        ),
    )(x_flat, w_t, b2d)

    return out.reshape(nt * tn, kp)[:n, :k]


# ---------------------------------------------------------------------------
# Init + reference
# ---------------------------------------------------------------------------

def init_linear_params(key, in_features, out_features):
    """Deterministic kaiming_uniform_(nonlinearity='relu') init, zero bias."""
    gain = math.sqrt(2.0)
    bound = gain * math.sqrt(3.0 / in_features)
    weight = jax.random.uniform(
        key, (out_features, in_features), jnp.float32, minval=-bound, maxval=bound
    )
    bias = jnp.zeros((out_features,), jnp.float32)
    return weight, bias


def reference_forward(x_nchw, weight, bias):
    pooled = jnp.mean(x_nchw.astype(jnp.float32), axis=(2, 3))   # (N, C)
    return pooled @ weight.T + bias                              # (N, K)


# ---------------------------------------------------------------------------
# Self-test
# ---------------------------------------------------------------------------

if __name__ == "__main__":
    key = jax.random.PRNGKey(0)
    k_x, k_w, k_x2, k_x3 = jax.random.split(key, 4)

    body_out_channel, num_classes, spatial = 32, 10, 8
    weight, bias = init_linear_params(k_w, body_out_channel, num_classes)

    # 1) Small f32 NCHW (batch=2, C=32, 8x8): single spatial chunk, 2 batch tiles.
    x = jax.random.normal(k_x, (2, body_out_channel, spatial, spatial), jnp.float32)
    out = jax.block_until_ready(sk_clf_head(x, weight, bias))
    ref = reference_forward(x, weight, bias)
    assert out.shape == (2, num_classes)
    assert jnp.allclose(out, ref, atol=1e-4, rtol=1e-4)

    # 2) Forced spatial chunking + remainder masking via a small budget override.
    w2, b2 = init_linear_params(k_w, 16, num_classes)
    x2 = jax.random.normal(k_x2, (2, 16, 76, 76), jnp.float32)
    out2 = jax.block_until_ready(
        sk_clf_head(x2, w2, b2, max_vmem_bytes=3 * 1024 * 1024))
    assert jnp.allclose(out2, reference_forward(x2, w2, b2), atol=1e-4, rtol=1e-4)

    # 3) bf16 input streamed at native dtype, f32 accumulation (multi batch tiles).
    x3 = jax.random.normal(
        k_x3, (16, body_out_channel, spatial, spatial), jnp.float32)
    x3_bf = x3.astype(jnp.bfloat16)
    out3 = jax.block_until_ready(sk_clf_head(x3_bf, weight, bias))
    ref3 = reference_forward(x3_bf.astype(jnp.float32), weight, bias)
    assert jnp.allclose(out3, ref3, atol=2e-3, rtol=2e-3)

    # 4) Channels-last (NHWC producer) lane-dense path.
    x4 = jnp.transpose(x3, (0, 2, 3, 1))   # test-only data construction
    out4 = jax.block_until_ready(sk_clf_head(x4, weight, bias, channels_last=True))
    assert jnp.allclose(out4, reference_forward(x3, weight, bias),
                        atol=1e-4, rtol=1e-4)

    print("KERNEL_OK")
</pallas_src>

<mosaic_0001>
module attributes {stable_mosaic.version = 11 : i64} {
  func.func @kernel(%arg0: i32, %arg1: i32, %arg2: memref<1x32x64xf32, #tpu.memory_space<vmem>>, %arg3: memref<32x128xf32, #tpu.memory_space<vmem>>, %arg4: memref<1x128xf32, #tpu.memory_space<vmem>>, %arg5: memref<1x1x128xf32, #tpu.memory_space<vmem>>, %arg6: memref<1x32xf32, #tpu.memory_space<vmem>>) attributes {dimension_semantics = [#tpu.dimension_semantics<parallel>, #tpu.dimension_semantics<arbitrary>], iteration_bounds = array<i64: 2, 1>, scalar_prefetch = 0 : i64, scratch_operands = 1 : i64, tpu.core_type = #tpu.core_type<tc>, window_params = [{transform_indices = @transform_0, window_bounds = array<i64: 1, 32, 64>}, {pipeline_mode = #tpu.pipeline_mode<synchronous>, transform_indices = @transform_1, window_bounds = array<i64: 32, 128>}, {pipeline_mode = #tpu.pipeline_mode<synchronous>, transform_indices = @transform_2, window_bounds = array<i64: 1, 128>}, {transform_indices = @transform_3, window_bounds = array<i64: 1, 1, 128>}]} {
    %c0_i32 = arith.constant 0 : i32
    %0 = arith.cmpi eq, %arg1, %c0_i32 : i32
    %1 = arith.extui %0 : i1 to i32
    %c0_i32_0 = arith.constant 0 : i32
    %2 = arith.cmpi ne, %1, %c0_i32_0 : i32
    scf.if %2 {
      %cst_9 = arith.constant 0.000000e+00 : f32
      %11 = vector.broadcast %cst_9 : f32 to vector<1x32xf32>
      %c0_10 = arith.constant 0 : index
      %c0_11 = arith.constant 0 : index
      %12 = vector.load %arg6[%c0_10, %c0_11] : memref<1x32xf32, #tpu.memory_space<vmem>>, vector<1x32xf32>
      tpu.vector_store %arg6[%c0_10, %c0_11], %11 {strides = array<i32>} : memref<1x32xf32, #tpu.memory_space<vmem>>, vector<1x32xf32>,
    } else {
    }
    %c0 = arith.constant 0 : index
    %c0_1 = arith.constant 0 : index
    %c0_2 = arith.constant 0 : index
    %3 = vector.load %arg2[%c0, %c0_1, %c0_2] : memref<1x32x64xf32, #tpu.memory_space<vmem>>, vector<1x32x64xf32>
    %c0_3 = arith.constant 0 : index
    %c0_4 = arith.constant 0 : index
    %4 = vector.load %arg6[%c0_3, %c0_4] : memref<1x32xf32, #tpu.memory_space<vmem>>, vector<1x32xf32>
    %cst = arith.constant dense<0.000000e+00> : vector<1x32xf32>
    %5 = vector.multi_reduction <add>, %3, %cst [2] : vector<1x32x64xf32> to vector<1x32xf32>
    %6 = arith.addf %4, %5 : vector<1x32xf32>
    %c0_5 = arith.constant 0 : index
    %c0_6 = arith.constant 0 : index
    %7 = vector.load %arg6[%c0_5, %c0_6] : memref<1x32xf32, #tpu.memory_space<vmem>>, vector<1x32xf32>
    tpu.vector_store %arg6[%c0_5, %c0_6], %6 {strides = array<i32>} : memref<1x32xf32, #tpu.memory_space<vmem>>, vector<1x32xf32>,
    %c0_i32_7 = arith.constant 0 : i32
    %8 = arith.cmpi eq, %arg1, %c0_i32_7 : i32
    %9 = arith.extui %8 : i1 to i32
    %c0_i32_8 = arith.constant 0 : i32
    %10 = arith.cmpi ne, %9, %c0_i32_8 : i32
    scf.if %10 {
      %c0_9 = arith.constant 0 : index
      %c0_10 = arith.constant 0 : index
      %11 = vector.load %arg6[%c0_9, %c0_10] : memref<1x32xf32, #tpu.memory_space<vmem>>, vector<1x32xf32>
      %c0_11 = arith.constant 0 : index
      %c0_12 = arith.constant 0 : index
      %12 = vector.load %arg3[%c0_11, %c0_12] : memref<32x128xf32, #tpu.memory_space<vmem>>, vector<32x128xf32>
      %cst_13 = arith.constant dense<0.000000e+00> : vector<1x128xf32>
      %13 = tpu.matmul %11, %12, %cst_13 {dimension_numbers = #tpu.dot_dimension_numbers<[1], [0], [0], [1], [0, 0, 1, 1], [], []>} : vector<1x32xf32>, vector<32x128xf32>, vector<1x128xf32> -> vector<1x128xf32>
      %c0_14 = arith.constant 0 : index
      %c0_15 = arith.constant 0 : index
      %14 = vector.load %arg4[%c0_14, %c0_15] : memref<1x128xf32, #tpu.memory_space<vmem>>, vector<1x128xf32>
      %15 = arith.addf %13, %14 : vector<1x128xf32>
      %c0_16 = arith.constant 0 : index
      %c0_17 = arith.constant 0 : index
      %c0_18 = arith.constant 0 : index
      %16 = vector.load %arg5[%c0_16, %c0_17, %c0_18] : memref<1x1x128xf32, #tpu.memory_space<vmem>>, vector<1x1x128xf32>
      %17 = vector.shape_cast %16 : vector<1x1x128xf32> to vector<1x128xf32>
      %18 = vector.shape_cast %15 : vector<1x128xf32> to vector<1x1x128xf32>
      tpu.vector_store %arg5[%c0_16, %c0_17, %c0_18], %18 {strides = array<i32>} : memref<1x1x128xf32, #tpu.memory_space<vmem>>, vector<1x1x128xf32>,
    } else {
    }
    return
  }
  func.func @transform_0(%arg0: i32, %arg1: i32) -> (i32, i32, i32) {
    %c0_i32 = arith.constant 0 : i32
    %c0_i32_0 = arith.constant 0 : i32
    return %arg0, %c0_i32, %arg1 : i32, i32, i32
  }
  func.func @transform_1(%arg0: i32, %arg1: i32) -> (i32, i32) {
    %c0_i32 = arith.constant 0 : i32
    %c0_i32_0 = arith.constant 0 : i32
    %c0_i32_1 = arith.constant 0 : i32
    return %c0_i32, %c0_i32_0 : i32, i32
  }
  func.func @transform_2(%arg0: i32, %arg1: i32) -> (i32, i32) {
    %c0_i32 = arith.constant 0 : i32
    %c0_i32_0 = arith.constant 0 : i32
    %c0_i32_1 = arith.constant 0 : i32
    return %c0_i32, %c0_i32_0 : i32, i32
  }
  func.func @transform_3(%arg0: i32, %arg1: i32) -> (i32, i32, i32) {
    %c0_i32 = arith.constant 0 : i32
    %c0_i32_0 = arith.constant 0 : i32
    %c0_i32_1 = arith.constant 0 : i32
    return %arg0, %c0_i32, %c0_i32_0 : i32, i32, i32
  }
}

</mosaic_0001>

<llo_original>
// kernel: tpu_custom_call.1
$region0: #{tpu_custom_call.1}
  #allocation0 [shape = 'u32[]', space=smem, size = 0x4, offset = 0x4, fixed_abs, tag = 'smem constant byte address 0x4 - core index']
  #allocation1 [shape = 'u32[72,128]{1,0:T(1,128)}', space=vmem, size = 0x9000, scoped, tag = 'internal scratch']
  #allocation2 [shape = 'f32[1,32]{1,0:T(1,128)}', space=vmem, size = 0x200, scoped, tag = 'scratch operand']
  %s0 = inlined_call_operand.hbm [shape: f32[2,32,64], index: 0, kind: input, shape index: {}]
  %s1 = inlined_call_operand.hbm [shape: f32[32,128], index: 1, kind: input, shape index: {}]
  %s2 = inlined_call_operand.vmem [shape: f32[1,128], index: 2, kind: input, shape index: {}]
  %s3 = inlined_call_operand.hbm [shape: f32[2,1,128], index: 3, kind: output, shape index: {}]
  %s4 = sld [smem:[#allocation0]]
  $region61: #{tpu_custom_call.1} parent=0
    _
  %s6 = ssub.s32 1, %s4
  %s7 = scalar_select 0, %s6, %s4
  $region1: #{tpu_custom_call.1} parent=0
    #allocation3 [shape = 'u8[32768]{0}', space=vmem, size = 0x8000, scoped, tag = 'input window, operand 0']
    #allocation4 [shape = 's32[2]{0}', space=sflag, size = 0x8, scoped, tag = 'scoped memory for tpu_custom_call.1']
    #allocation5 [shape = 's32[2]{0}', space=sflag, size = 0x8, scoped, tag = 'scoped memory for tpu_custom_call.1']
    #allocation6 [shape = 'u8[16384]{0}', space=vmem, size = 0x4000, scoped, tag = 'input window, operand 1, single buffered']
    #allocation7 [shape = 's32[1]{0}', space=sflag, size = 0x4, scoped, tag = 'scoped memory for tpu_custom_call.1']
    #allocation8 [shape = 'u8[1024]{0}', space=vmem, size = 0x400, scoped, tag = 'output window, operand 0']
    %8 = vsyncpa [#allocation4], 0
    %s9 = scalar_lea.sflag [#allocation4], 1
    %10 = vsyncpa %s9, 0
    %11 = vsyncpa [#allocation7], 0
    %12 = vsyncpa [#allocation5], 0
    %s13 = scalar_lea.sflag [#allocation5], 1
    %14 = vsyncpa %s13, 0
    loop: start=0, step=1, limit=4
    $region2: #{tpu_custom_call.1} parent=1 // loop_pre_header
      _
    $region3: #{tpu_custom_call.1} parent=1 // loop_header
      %s16 = sphi 0, %s20
      %p17 = scmp.ge.s32.totalorder %s16, 4
      %s23 = sphi 0, %s35
      %s24 = sphi 0, %s31
      %s25 = sphi 0, %s23
      %s26 = sphi 0, %s24
      %s27 = sphi 0, %s25
      %s28 = sphi 0, %s26
      %s40 = sphi 0, %s42
      %s43 = sphi 0, %s40
      %s44 = sphi 0, %s43
      %s60 = sphi 0, %s44
      %s64 = sphi 0, %s64
      %s66 = sphi 0, %s64
      %s67 = sphi 0, %s66
      %s81 = sphi 0, %s67
      %s85 = sphi 0, %s85
      %s87 = sphi 0, %s85
      %s88 = sphi 0, %s87
      %s102 = sphi 0, %s88
      %s108 = sphi 0, %s110
      %s111 = sphi 0, %s108
      %s112 = sphi 0, %s111
      %s128 = sphi 0, %s112
    $region4: #{tpu_custom_call.1} parent=1 // loop_header_branch
      %19 = sbr.rel (%p17) target = $region8
    $region5: #{tpu_custom_call.1} parent=1 // loop_body
      %s21 = ssub.s32 %s16, 1
      %s22 = ssub.s32 %s16, 2
      %s29 = sadd.s32 1, %s24
      %p30 = scmp.ge.s32.totalorder %s29, 1
      %s31 = scalar_select %p30, 0, %s29
      %s32 = sadd.s32 1, %s23
      %s33 = scalar_select %p30, %s32, %s23
      %p34 = scmp.ge.s32.totalorder %s33, 2
      %s35 = scalar_select %p34, 0, %s33
      %s36 = ssub.s32 %s23, %s35
      %s37 = ssub.s32 %s24, %s31
      %s38 = sor.u32 %s36, %s37
      %p39 = scmp.eq.s32.totalorder %s38, 0
      %s41 = sadd.s32 %s40, 1
      %s42 = scalar_select %p39, %s40, %s41
      %p45 = pneg %p39
      %p46 = scmp.eq.s32.totalorder %s16, 1
      %p47 = por %p45, %p46
      %p48 = scmp.ne.s32.totalorder %s40, %s43
      %p49 = scmp.eq.s32.totalorder %s16, 0
      %p50 = por %p48, %p49
      %p51 = scmp.ne.s32.totalorder %s40, %s43
      %p52 = scmp.eq.s32.totalorder %s21, 1
      %p53 = por %p51, %p52
      %p54 = scmp.ne.s32.totalorder %s43, %s44
      %p55 = scmp.eq.s32.totalorder %s21, 0
      %p56 = por %p54, %p55
      %p57 = scmp.ne.s32.totalorder %s43, %s44
      %p58 = scmp.eq.s32.totalorder %s22, 1
      %p59 = por %p57, %p58
      %p61 = scmp.ne.s32.totalorder %s44, %s60
      %p62 = scmp.eq.s32.totalorder %s22, 0
      %p63 = por %p61, %p62
      %s65 = sadd.s32 %s64, 1
      %p68 = scmp.eq.s32.totalorder %s16, 1
      %p69 = scmp.ne.s32.totalorder %s64, %s66
      %p70 = scmp.eq.s32.totalorder %s16, 0
      %p71 = por %p69, %p70
      %p72 = scmp.ne.s32.totalorder %s64, %s66
      %p73 = scmp.eq.s32.totalorder %s21, 1
      %p74 = por %p72, %p73
      %p75 = scmp.ne.s32.totalorder %s66, %s67
      %p76 = scmp.eq.s32.totalorder %s21, 0
      %p77 = por %p75, %p76
      %p78 = scmp.ne.s32.totalorder %s66, %s67
      %p79 = scmp.eq.s32.totalorder %s22, 1
      %p80 = por %p78, %p79
      %p82 = scmp.ne.s32.totalorder %s67, %s81
      %p83 = scmp.eq.s32.totalorder %s22, 0
      %p84 = por %p82, %p83
      %s86 = sadd.s32 %s85, 1
      %p89 = scmp.eq.s32.totalorder %s16, 1
      %p90 = scmp.ne.s32.totalorder %s85, %s87
      %p91 = scmp.eq.s32.totalorder %s16, 0
      %p92 = por %p90, %p91
      %p93 = scmp.ne.s32.totalorder %s85, %s87
      %p94 = scmp.eq.s32.totalorder %s21, 1
      %p95 = por %p93, %p94
      %p96 = scmp.ne.s32.totalorder %s87, %s88
      %p97 = scmp.eq.s32.totalorder %s21, 0
      %p98 = por %p96, %p97
      %p99 = scmp.ne.s32.totalorder %s87, %s88
      %p100 = scmp.eq.s32.totalorder %s22, 1
      %p101 = por %p99, %p100
      %p103 = scmp.ne.s32.totalorder %s88, %s102
      %p104 = scmp.eq.s32.totalorder %s22, 0
      %p105 = por %p103, %p104
      %s106 = ssub.s32 %s23, %s35
      %p107 = scmp.eq.s32.totalorder %s106, 0
      %s109 = sadd.s32 %s108, 1
      %s110 = scalar_select %p107, %s108, %s109
      %p113 = pneg %p107
      %p114 = scmp.eq.s32.totalorder %s16, 1
      %p115 = por %p113, %p114
      %p116 = scmp.ne.s32.totalorder %s108, %s111
      %p117 = scmp.eq.s32.totalorder %s16, 0
      %p118 = por %p116, %p117
      %p119 = scmp.ne.s32.totalorder %s108, %s111
      %p120 = scmp.eq.s32.totalorder %s21, 1
      %p121 = por %p119, %p120
      %p122 = scmp.ne.s32.totalorder %s111, %s112
      %p123 = scmp.eq.s32.totalorder %s21, 0
      %p124 = por %p122, %p123
      %p125 = scmp.ne.s32.totalorder %s111, %s112
      %p126 = scmp.eq.s32.totalorder %s22, 1
      %p127 = por %p125, %p126
      %p129 = scmp.ne.s32.totalorder %s112, %s128
      %p130 = scmp.eq.s32.totalorder %s22, 0
      %p131 = por %p129, %p130
      %p132 = scmp.le.s32.totalorder 1, %s16
      %p133 = scmp.lt.s32.totalorder %s16, 3
      %p134 = pnand %p132, %p133
      %p135 = pneg %p134
      // Predicated region
      $region9: #{tpu_custom_call.1} parent=5 // pred_check
        _
      $region10: #{tpu_custom_call.1} parent=5 // pred_check_branch
        %137 = sbr.rel (%p134) target = $region12
      $region11: #{tpu_custom_call.1} parent=5 // pred_region
        %s138 = ssub.s32 %s16, 1
        // Predicated region
        $region13: #{tpu_custom_call.1} parent=11 // pred_check
          %p139 = pneg %p77
        $region14: #{tpu_custom_call.1} parent=11 // pred_check_branch
          %141 = sbr.rel (%p139) target = $region16
        $region15: #{tpu_custom_call.1} parent=11 // pred_region
          %143 = vsyncadd [#allocation7], 0
          %s144 = sshll.u32 %s1, 4
          %s145 = int_to_ptr.hbm [resolvable:$true] %s144
          %s146 = sshll.u32 [#allocation6], 4
          %s147 = int_to_ptr.vmem [resolvable:$true] %s146
          %152 = dma.hbm_to_vmem [thread:$0]  %s145, 512, %s147, [#allocation7], 128, 128, 8
        $region16: #{tpu_custom_call.1} parent=11 // pred_fallthru
          _
        // Predicated region
        $region17: #{tpu_custom_call.1} parent=11 // pred_check
          %p153 = pneg %p98
        $region18: #{tpu_custom_call.1} parent=11 // pred_check_branch
          %155 = sbr.rel (%p153) target = $region20
        $region19: #{tpu_custom_call.1} parent=11 // pred_region
          _
        $region20: #{tpu_custom_call.1} parent=11 // pred_fallthru
          _
      $region12: #{tpu_custom_call.1} parent=5 // pred_fallthru
        _
      %p156 = scmp.lt.s32.totalorder %s16, 2
      // Predicated region
      $region21: #{tpu_custom_call.1} parent=5 // pred_check
        %p157 = pneg %p156
      $region22: #{tpu_custom_call.1} parent=5 // pred_check_branch
        %159 = sbr.rel (%p157) target = $region24
      $region23: #{tpu_custom_call.1} parent=5 // pred_region
        // Predicated region
        $region25: #{tpu_custom_call.1} parent=23 // pred_check
          %p160 = pneg %p50
        $region26: #{tpu_custom_call.1} parent=23 // pred_check_branch
          %162 = sbr.rel (%p160) target = $region28
        $region27: #{tpu_custom_call.1} parent=23 // pred_region
          %s163 = sand.u32 %s40, 1
          %s164 = scalar_lea.sflag [#allocation4], %s163
          %s165 = sand.u32 %s40, 1
          %s166 = smul.addr %s165, 32
          %s167 = scalar_lea.vmem [#allocation3], %s166
          %169 = vsyncadd %s164, 0
          %s170 = smul.addr %s23, 4
          %s171 = sadd.s32 %s24, %s170
          %s172 = smul.addr %s171, 8
          %s173 = scalar_lea.hbm %s0, %s172
          %s174 = sshll.u32 %s173, 4
          %s175 = int_to_ptr.hbm [resolvable:$true] %s174
          %s176 = sshll.u32 %s167, 4
          %s177 = int_to_ptr.vmem [resolvable:$true] %s176
          %182 = dma.hbm_to_vmem [thread:$0]  %s175, 512, %s177, %s164, 128, 128, 8
        $region28: #{tpu_custom_call.1} parent=23 // pred_fallthru
          _
      $region24: #{tpu_custom_call.1} parent=5 // pred_fallthru
        _
      %p183 = scmp.le.s32.totalorder 1, %s16
      %p184 = scmp.lt.s32.totalorder %s16, 3
      %p185 = pnand %p183, %p184
      %p186 = pneg %p185
      // Predicated region
      $region29: #{tpu_custom_call.1} parent=5 // pred_check
        _
      $region30: #{tpu_custom_call.1} parent=5 // pred_check_branch
        %188 = sbr.rel (%p185) target = $region32
      $region31: #{tpu_custom_call.1} parent=5 // pred_region
        %s189 = ssub.s32 %s16, 1
        %s190 = sand.u32 %s43, 1
        %s191 = scalar_lea.sflag [#allocation4], %s190
        %s192 = sand.u32 %s43, 1
        %s193 = smul.addr %s192, 32
        %s194 = scalar_lea.vmem [#allocation3], %s193
        // Predicated region
        $region33: #{tpu_custom_call.1} parent=31 // pred_check
          %p195 = pneg %p56
        $region34: #{tpu_custom_call.1} parent=31 // pred_check_branch
          %197 = sbr.rel (%p195) target = $region36
        $region35: #{tpu_custom_call.1} parent=31 // pred_region
          %199 = dma.done %s191, 512
        $region36: #{tpu_custom_call.1} parent=31 // pred_fallthru
          _
        // Predicated region
        $region37: #{tpu_custom_call.1} parent=31 // pred_check
          %p200 = pneg %p77
        $region38: #{tpu_custom_call.1} parent=31 // pred_check_branch
          %202 = sbr.rel (%p200) target = $region40
        $region39: #{tpu_custom_call.1} parent=31 // pred_region
          %204 = dma.done [#allocation7], 512
        $region40: #{tpu_custom_call.1} parent=31 // pred_fallthru
          _
        %s205 = sand.u32 %s43, 1
        %s206 = scalar_lea.sflag [#allocation4], %s205
        %s207 = sand.u32 %s43, 1
        %s208 = smul.addr %s207, 32
        %s209 = scalar_lea.vmem [#allocation3], %s208
        %p210 = pneg %p56
        %p211 = pneg %p53
        %p212 = pneg %p77
        %p213 = pneg %p74
        %p214 = pneg %p98
        %p215 = pneg %p95
        %p216 = pneg %p124
        %p217 = pneg %p121
        %s218 = sand.u32 %s111, 1
        %s219 = scalar_lea.sflag [#allocation5], %s218
        %s220 = sand.u32 %s111, 1
        %s221 = scalar_lea.vmem [#allocation8], %s220
        %p222 = scmp.eq.s32.totalorder %s26, 0
        // Predicated region
        $region41: #{tpu_custom_call.1} parent=31 // pred_check
          %p223 = pneg %p222
        $region42: #{tpu_custom_call.1} parent=31 // pred_check_branch
          %225 = sbr.rel (%p223) target = $region44
        $region43: #{tpu_custom_call.1} parent=31 // pred_region
          %vm226 = vcmask 253952
          %227 = vst.msk [vmem:[#allocation2] sm:$0x1] %vm226, 0.0
        $region44: #{tpu_custom_call.1} parent=31 // pred_fallthru
          _
        %v228 = vld [vmem:[%s194] sm:$0xff]
        %v229 = vld [vmem:[%s194 + $0x8] sm:$0xff]
        %v230 = vld [vmem:[%s194 + $0x10] sm:$0xff]
        %v231 = vld [vmem:[%s194 + $0x18] sm:$0xff]
        %v232 = vld [vmem:[#allocation2] sm:$0x1]
        %vm233 = vcmask 523264
        %v234 = vsel %vm233, %v228, 0.0
        %235 = vadd.xlane.f32.xlu0 %v234
        %v236 = vpop.xlane.xlu0 %235
        %v237 = vsel %vm233, %v229, 0.0
        %238 = vadd.xlane.f32.xlu0 %v237
        %v239 = vpop.xlane.xlu0 %238
        %v240 = vsel %vm233, %v230, 0.0
        %241 = vadd.xlane.f32.xlu0 %v240
        %v242 = vpop.xlane.xlu0 %241
        %v243 = vsel %vm233, %v231, 0.0
        %244 = vadd.xlane.f32.xlu0 %v243
        %v245 = vpop.xlane.xlu0 %244
        %v250 = vperm.slane %v236, 0
        %v251 = vperm.slane %v236, 1
        %v252 = vperm.slane %v236, 2
        %v253 = vperm.slane %v236, 3
        %v254 = vperm.slane %v236, 4
        %v255 = vperm.slane %v236, 5
        %v256 = vperm.slane %v236, 6
        %v257 = vperm.slane %v236, 7
        %v258 = vperm.slane %v239, 0
        %v259 = vperm.slane %v239, 1
        %v260 = vperm.slane %v239, 2
        %v261 = vperm.slane %v239, 3
        %v262 = vperm.slane %v239, 4
        %v263 = vperm.slane %v239, 5
        %v264 = vperm.slane %v239, 6
        %v265 = vperm.slane %v239, 7
        %v266 = vperm.slane %v242, 0
        %v267 = vperm.slane %v242, 1
        %v268 = vperm.slane %v242, 2
        %v269 = vperm.slane %v242, 3
        %v270 = vperm.slane %v242, 4
        %v271 = vperm.slane %v242, 5
        %v272 = vperm.slane %v242, 6
        %v273 = vperm.slane %v242, 7
        %v274 = vperm.slane %v245, 0
        %v275 = vperm.slane %v245, 1
        %v276 = vperm.slane %v245, 2
        %v277 = vperm.slane %v245, 3
        %v278 = vperm.slane %v245, 4
        %v279 = vperm.slane %v245, 5
        %v280 = vperm.slane %v245, 6
        %v281 = vperm.slane %v245, 7
        %282 = vst [vmem:[#allocation1] ss:$9 sm:$0xff] %v250
        %s283 = scalar_lea.vmem [#allocation1], 1
        %284 = vst [vmem:[%s283] ss:$9 sm:$0xff] %v251
        %s285 = scalar_lea.vmem [#allocation1], 2
        %286 = vst [vmem:[%s285] ss:$9 sm:$0xff] %v252
        %s287 = scalar_lea.vmem [#allocation1], 3
        %288 = vst [vmem:[%s287] ss:$9 sm:$0xff] %v253
        %s289 = scalar_lea.vmem [#allocation1], 4
        %290 = vst [vmem:[%s289] ss:$9 sm:$0xff] %v254
        %s291 = scalar_lea.vmem [#allocation1], 5
        %292 = vst [vmem:[%s291] ss:$9 sm:$0xff] %v255
        %s293 = scalar_lea.vmem [#allocation1], 6
        %294 = vst [vmem:[%s293] ss:$9 sm:$0xff] %v256
        %s295 = scalar_lea.vmem [#allocation1], 7
        %296 = vst [vmem:[%s295] ss:$9 sm:$0xff] %v257
        %v297 = vld [vmem:[#allocation1] sm:$0xff]
        %298 = vst [vmem:[#allocation1] ss:$9 sm:$0xff] %v258
        %299 = vst [vmem:[%s283] ss:$9 sm:$0xff] %v259
        %300 = vst [vmem:[%s285] ss:$9 sm:$0xff] %v260
        %301 = vst [vmem:[%s287] ss:$9 sm:$0xff] %v261
        %302 = vst [vmem:[%s289] ss:$9 sm:$0xff] %v262
        %303 = vst [vmem:[%s291] ss:$9 sm:$0xff] %v263
        %304 = vst [vmem:[%s293] ss:$9 sm:$0xff] %v264
        %305 = vst [vmem:[%s295] ss:$9 sm:$0xff] %v265
        %v306 = vld [vmem:[#allocation1] sm:$0xff]
        %307 = vst [vmem:[#allocation1] ss:$9 sm:$0xff] %v266
        %308 = vst [vmem:[%s283] ss:$9 sm:$0xff] %v267
        %309 = vst [vmem:[%s285] ss:$9 sm:$0xff] %v268
        %310 = vst [vmem:[%s287] ss:$9 sm:$0xff] %v269
        %311 = vst [vmem:[%s289] ss:$9 sm:$0xff] %v270
        %312 = vst [vmem:[%s291] ss:$9 sm:$0xff] %v271
        %313 = vst [vmem:[%s293] ss:$9 sm:$0xff] %v272
        %314 = vst [vmem:[%s295] ss:$9 sm:$0xff] %v273
        %v315 = vld [vmem:[#allocation1] sm:$0xff]
        %316 = vst [vmem:[#allocation1] ss:$9 sm:$0xff] %v274
        %317 = vst [vmem:[%s283] ss:$9 sm:$0xff] %v275
        %318 = vst [vmem:[%s285] ss:$9 sm:$0xff] %v276
        %319 = vst [vmem:[%s287] ss:$9 sm:$0xff] %v277
        %320 = vst [vmem:[%s289] ss:$9 sm:$0xff] %v278
        %321 = vst [vmem:[%s291] ss:$9 sm:$0xff] %v279
        %322 = vst [vmem:[%s293] ss:$9 sm:$0xff] %v280
        %323 = vst [vmem:[%s295] ss:$9 sm:$0xff] %v281
        %v324 = vld [vmem:[#allocation1] sm:$0xff]
        %325 = vset.pattern.permute.xlu0 0
        %326 = vperm.xlu0 %325, %v297
        %v327 = vpop.permute.xlu0 %326
        %328 = vset.pattern.permute.xlu0 0
        %329 = vperm.xlu0 %328, %v306
        %v330 = vpop.permute.xlu0 %329
        %331 = vset.pattern.permute.xlu0 0
        %332 = vperm.xlu0 %331, %v315
        %v333 = vpop.permute.xlu0 %332
        %334 = vset.pattern.permute.xlu0 0
        %335 = vperm.xlu0 %334, %v324
        %v336 = vpop.permute.xlu0 %335
        %v337 = vlaneseq
        %v338 = vand.u32 %v337, 127
        %v339 = vperm.slane %v327, %v338
        %v340 = vadd.s32 %v338, 4294967288
        %v341 = vperm.slane %v330, %v340
        %vm342 = vcmask 130112
        %v343 = vsel %vm342, %v341, %v339
        %v344 = vadd.s32 %v338, 4294967280
        %v345 = vperm.slane %v333, %v344
        %vm346 = vcmask 195712
        %v347 = vsel %vm346, %v345, %v343
        %v348 = vadd.s32 %v338, 4294967272
        %v349 = vperm.slane %v336, %v348
        %vm350 = vcmask 261312
        %v351 = vsel %vm350, %v349, %v347
        %v353 = vadd.f32 %v232, %v351
        %vm354 = vcmask 253952
        %355 = vst.msk [vmem:[#allocation2] sm:$0x1] %vm354, %v353
        // Predicated region
        $region45: #{tpu_custom_call.1} parent=31 // pred_check
          %p356 = pneg %p222
        $region46: #{tpu_custom_call.1} parent=31 // pred_check_branch
          %358 = sbr.rel (%p356) target = $region48
        $region47: #{tpu_custom_call.1} parent=31 // pred_region
          %v359 = vld [vmem:[#allocation2] sm:$0x1]
          %v360 = vld [vmem:[#allocation6] sm:$0xff]
          %v361 = vld [vmem:[#allocation6 + $0x8] sm:$0xff]
          %v362 = vld [vmem:[#allocation6 + $0x10] sm:$0xff]
          %v363 = vld [vmem:[#allocation6 + $0x18] sm:$0xff]
          %v364 = vld [vmem:[%s2] sm:$0x1]
          %vm365 = vcmask 261120
          %v367 = vsel %vm365, %v359, 0
          %369 = vmatpush.msra.mxu0 0.0
          %370 = vmatpush.msra.mxu0 0.0
          %371 = vmatpush.msra.mxu0 0.0
          %372 = vmatpush.msra.mxu0 0.0
          %373 = vmatpush.msra.mxu0 0.0
          %374 = vmatpush.msra.mxu0 0.0
          %375 = vmatpush.msra.mxu0 0.0
          %376 = vmatpush.msra.mxu0 0.0
          %377 = vmatpush.msra.mxu0 0.0
          %378 = vmatpush.msra.mxu0 0.0
          %379 = vmatpush.msra.mxu0 0.0
          %380 = vmatpush.msra.mxu0 0.0
          %381 = vmatpush.msra.mxu0 %v363
          %382 = vmatpush.msra.mxu0 %v362
          %383 = vmatpush.msra.mxu0 %v361
          %384 = vmatpush.msra.mxu0 %v360
          %385 = vmatmul.f32.gmra.mxu0 %v367
          %v386 = vpop.f32.mrf.mxu0
          %v387 = vadd.f32 %v364, %v386
          %388 = vdwg.mxu0
          %389 = vst [vmem:[%s221] sm:$0x1] %v387
        $region48: #{tpu_custom_call.1} parent=31 // pred_fallthru
          _
        %s390 = sand.u32 %s111, 1
        %s391 = scalar_lea.sflag [#allocation5], %s390
        %s392 = sand.u32 %s111, 1
        %s393 = scalar_lea.vmem [#allocation8], %s392
        // Predicated region
        $region49: #{tpu_custom_call.1} parent=31 // pred_check
          %p394 = pneg %p121
        $region50: #{tpu_custom_call.1} parent=31 // pred_check_branch
          %396 = sbr.rel (%p394) target = $region52
        $region51: #{tpu_custom_call.1} parent=31 // pred_region
          %398 = vsyncadd %s391, 0
          %s399 = scalar_lea.hbm %s3, %s25
          %s401 = sshll.u32 %s393, 4
          %s402 = int_to_ptr.vmem [resolvable:$true] %s401
          %s403 = sshll.u32 %s399, 4
          %s404 = int_to_ptr.hbm [resolvable:$true] %s403
          %406 = dma.vmem_to_hbm [thread:$0]  %s402, 16, %s404, %s391
        $region52: #{tpu_custom_call.1} parent=31 // pred_fallthru
          _
      $region32: #{tpu_custom_call.1} parent=5 // pred_fallthru
        _
      %p407 = scmp.le.s32.totalorder 2, %s16
      // Predicated region
      $region53: #{tpu_custom_call.1} parent=5 // pred_check
        %p408 = pneg %p407
      $region54: #{tpu_custom_call.1} parent=5 // pred_check_branch
        %410 = sbr.rel (%p408) target = $region56
      $region55: #{tpu_custom_call.1} parent=5 // pred_region
        %s411 = ssub.s32 %s16, 2
        // Predicated region
        $region57: #{tpu_custom_call.1} parent=55 // pred_check
          %p412 = pneg %p127
        $region58: #{tpu_custom_call.1} parent=55 // pred_check_branch
          %414 = sbr.rel (%p412) target = $region60
        $region59: #{tpu_custom_call.1} parent=55 // pred_region
          %s415 = sand.u32 %s112, 1
          %s416 = scalar_lea.sflag [#allocation5], %s415
          %s417 = sand.u32 %s112, 1
          %s418 = scalar_lea.vmem [#allocation8], %s417
          %420 = dma.done %s416, 16
        $region60: #{tpu_custom_call.1} parent=55 // pred_fallthru
          _
      $region56: #{tpu_custom_call.1} parent=5 // pred_fallthru
        _
    $region6: #{tpu_custom_call.1} parent=1 // loop_footer
      %s20 = sadd.s32 1, %s16
    $region7: #{tpu_custom_call.1} parent=1 // loop_footer_branch
      %15 = sbr.rel target = $region3
    $region8: #{tpu_custom_call.1} parent=1 // loop_exit
      _
    %421 = vsyncpa [#allocation4], 1
    %s422 = scalar_lea.sflag [#allocation4], 1
    %423 = vsyncpa %s422, 1
    %424 = vsyncpa [#allocation7], 1
    %425 = vsyncpa [#allocation5], 1
    %s426 = scalar_lea.sflag [#allocation5], 1
    %427 = vsyncpa %s426, 1

</llo_original>
